<compile_context>
chip_gen: v7x
topology: tpu7x:2x2x1
jax: 0.10.0
libtpu: 0.0.40
codegen_flags: <defaults>
</compile_context>

<pallas_src>
import jax
import jax.numpy as jnp
from jax.experimental import pallas as pl
from jax.experimental.pallas import tpu as pltpu

HIDDEN = 24   # per-sample hidden width (PyTorch module)
PACK = 16     # samples packed per MXU pass (lane-dense: 16 * 8 = 128 out lanes)


def _round_up(x, m):
    return (x + m - 1) // m * m


def _block_diag(w, p):
    """(in, out) -> (p*in, p*out) with `w` repeated on the diagonal, exact zeros elsewhere."""
    fi, fo = w.shape
    out = jnp.zeros((p * fi, p * fo), w.dtype)
    for j in range(p):
        out = out.at[j * fi:(j + 1) * fi, j * fo:(j + 1) * fo].set(w)
    return out


def dqn_kernel(x_ref, w1_ref, b1_ref, w2_ref, b2_ref, w3_ref, b3_ref, out_ref):
    # x arrives f32 from HBM; cast to bf16 on the VPU (kernel is MXU-bound, cast is free-ish).
    x = x_ref[...].astype(jnp.bfloat16)
    # fc1 + ReLU (bf16 x bf16 -> f32 accumulate on the MXU)
    h1 = jnp.dot(x, w1_ref[...], preferred_element_type=jnp.float32) + b1_ref[...]
    h1 = jnp.maximum(h1, 0.0)
    # fc2 + ReLU
    h2 = jnp.dot(h1.astype(jnp.bfloat16), w2_ref[...],
                 preferred_element_type=jnp.float32) + b2_ref[...]
    h2 = jnp.maximum(h2, 0.0)
    # fc3 (no activation); per-sample columns beyond action_size are exact zero-padding.
    y = jnp.dot(h2.astype(jnp.bfloat16), w3_ref[...],
                preferred_element_type=jnp.float32) + b3_ref[...]
    out_ref[...] = y.astype(out_ref.dtype)


def dqn_forward(x, packed_params, action_size, *, tile_b=4096, pack=PACK):
    """x: (B, state_size) f32.  Returns (B, action_size) f32 Q-values."""
    w1, b1, w2, b2, w3, b3 = packed_params
    B, S = x.shape
    NP = w3.shape[1] // pack          # per-sample padded action width (8)

    # Pad batch only to a multiple of PACK (exact zeros: keeps samples within a
    # packed row independent even through the block-diagonal matmuls).
    B_pad = _round_up(B, pack)
    if B_pad != B:
        x = jnp.pad(x, ((0, B_pad - B), (0, 0)))
    n_rows = B_pad // pack
    xp = x.reshape(n_rows, pack * S)  # free row-major reshape, stays f32

    # Tile selection (in packed rows): amortize per-step overhead, keep blocks
    # sublane-aligned, and keep >=2 grid steps so v7x megacore gets both cores.
    tile_rows = max(1, min(tile_b // pack, n_rows))
    if tile_rows < n_rows:
        tile_rows = min(max(8, (tile_rows // 8) * 8), n_rows)
    if tile_rows == n_rows and n_rows >= 16:
        tile_rows = _round_up(pl.cdiv(n_rows, 2), 8)
    grid = (pl.cdiv(n_rows, tile_rows),)

    def resident(a):
        # constant index_map -> weights/biases stay VMEM-resident across grid steps
        return pl.BlockSpec(a.shape, lambda i, _nd=a.ndim: (0,) * _nd)

    flops = 2 * n_rows * (w1.shape[0] * w1.shape[1]
                          + w2.shape[0] * w2.shape[1]
                          + w3.shape[0] * w3.shape[1])
    bytes_accessed = (int(xp.size) * 4
                      + sum(int(p.size) * p.dtype.itemsize for p in packed_params)
                      + n_rows * pack * NP * 4)

    out = pl.pallas_call(
        dqn_kernel,
        out_shape=jax.ShapeDtypeStruct((n_rows, pack * NP), jnp.float32),
        grid=grid,
        in_specs=[
            pl.BlockSpec((tile_rows, pack * S), lambda i: (i, 0)),  # x: tiled over packed rows
            resident(w1), resident(b1),
            resident(w2), resident(b2),
            resident(w3), resident(b3),
        ],
        out_specs=pl.BlockSpec((tile_rows, pack * NP), lambda i: (i, 0)),
        compiler_params=pltpu.CompilerParams(
            dimension_semantics=("parallel",),
        ),
        cost_estimate=pl.CostEstimate(
            flops=flops, transcendentals=0, bytes_accessed=bytes_accessed),
    )(xp, w1, b1, w2, b2, w3, b3)

    # (n_rows, 128) -> (B_pad, 8) is a free reshape; slice off pad rows / pad actions.
    return out.reshape(B_pad, NP)[:B, :action_size]


def make_params(key, state_size, action_size, hidden=HIDDEN, pack=PACK):
    """PyTorch nn.Linear default init.  Returns (packed block-diagonal params, raw params)."""
    k1, k2, k3 = jax.random.split(key, 3)

    def linear(k, fan_in, fan_out):
        kw, kb = jax.random.split(k)
        bound = 1.0 / jnp.sqrt(float(fan_in))
        w = jax.random.uniform(kw, (fan_in, fan_out), jnp.float32, -bound, bound)
        b = jax.random.uniform(kb, (1, fan_out), jnp.float32, -bound, bound)
        return w, b

    w1, b1 = linear(k1, state_size, hidden)
    w2, b2 = linear(k2, hidden, hidden)
    w3, b3 = linear(k3, hidden, action_size)

    bf = lambda a: a.astype(jnp.bfloat16)
    raw = (bf(w1), b1, bf(w2), b2, bf(w3), b3)

    # Zero-pad fc3 outputs to a sublane-friendly per-sample width (exact; sliced off later).
    np_ = _round_up(action_size, 8)
    w3p = jnp.pad(w3, ((0, 0), (0, np_ - action_size)))
    b3p = jnp.pad(b3, ((0, 0), (0, np_ - action_size)))

    packed = (
        _block_diag(bf(w1), pack), jnp.tile(b1, (1, pack)),
        _block_diag(bf(w2), pack), jnp.tile(b2, (1, pack)),
        _block_diag(bf(w3p), pack), jnp.tile(b3p, (1, pack)),
    )
    return packed, raw


def reference_forward(x, raw_params):
    """Pure-JAX reference with the same bf16-input / f32-accumulate math (unpacked weights)."""
    w1, b1, w2, b2, w3, b3 = raw_params
    xb = x.astype(jnp.bfloat16)
    h1 = jnp.maximum(jnp.dot(xb, w1, preferred_element_type=jnp.float32) + b1, 0.0)
    h2 = jnp.maximum(jnp.dot(h1.astype(jnp.bfloat16), w2,
                             preferred_element_type=jnp.float32) + b2, 0.0)
    return jnp.dot(h2.astype(jnp.bfloat16), w3, preferred_element_type=jnp.float32) + b3


if __name__ == "__main__":
    key = jax.random.PRNGKey(0)
    k_params, k_x1, k_x2 = jax.random.split(key, 3)

    state_size = 16
    action_size = 6

    packed, raw = make_params(k_params, state_size, action_size)

    # Small batch (B=2 -> padded into a single packed row).
    x1 = jax.random.normal(k_x1, (2, state_size), jnp.float32)
    out1 = jax.block_until_ready(dqn_forward(x1, packed, action_size))
    ref1 = reference_forward(x1, raw)
    assert out1.shape == (2, action_size)
    assert jnp.allclose(out1, ref1, atol=1e-2, rtol=1e-2), "mismatch vs reference (B=2)"

    # Batch not a multiple of PACK: exercises conditional zero-pad + packing path.
    x2 = jax.random.normal(k_x2, (50, state_size), jnp.float32)
    out2 = jax.block_until_ready(dqn_forward(x2, packed, action_size))
    ref2 = reference_forward(x2, raw)
    assert out2.shape == (50, action_size)
    assert jnp.allclose(out2, ref2, atol=1e-2, rtol=1e-2), "mismatch vs reference (B=50)"

    print("KERNEL_OK")
</pallas_src>

<mosaic_0001>
module attributes {stable_mosaic.version = 11 : i64} {
  func.func @dqn_kernel(%arg0: i32, %arg1: memref<1x256xf32, #tpu.memory_space<vmem>>, %arg2: memref<256x384xbf16, #tpu.memory_space<vmem>>, %arg3: memref<1x384xf32, #tpu.memory_space<vmem>>, %arg4: memref<384x384xbf16, #tpu.memory_space<vmem>>, %arg5: memref<1x384xf32, #tpu.memory_space<vmem>>, %arg6: memref<384x128xbf16, #tpu.memory_space<vmem>>, %arg7: memref<1x128xf32, #tpu.memory_space<vmem>>, %arg8: memref<1x128xf32, #tpu.memory_space<vmem>>) attributes {dimension_semantics = [#tpu.dimension_semantics<parallel>], iteration_bounds = array<i64: 1>, scalar_prefetch = 0 : i64, scratch_operands = 0 : i64, tpu.core_type = #tpu.core_type<tc>, window_params = [{transform_indices = @transform_0, window_bounds = array<i64: 1, 256>}, {pipeline_mode = #tpu.pipeline_mode<synchronous>, transform_indices = @transform_1, window_bounds = array<i64: 256, 384>}, {pipeline_mode = #tpu.pipeline_mode<synchronous>, transform_indices = @transform_2, window_bounds = array<i64: 1, 384>}, {pipeline_mode = #tpu.pipeline_mode<synchronous>, transform_indices = @transform_3, window_bounds = array<i64: 384, 384>}, {pipeline_mode = #tpu.pipeline_mode<synchronous>, transform_indices = @transform_4, window_bounds = array<i64: 1, 384>}, {pipeline_mode = #tpu.pipeline_mode<synchronous>, transform_indices = @transform_5, window_bounds = array<i64: 384, 128>}, {pipeline_mode = #tpu.pipeline_mode<synchronous>, transform_indices = @transform_6, window_bounds = array<i64: 1, 128>}, {transform_indices = @transform_7, window_bounds = array<i64: 1, 128>}]} {
    %c0 = arith.constant 0 : index
    %c0_0 = arith.constant 0 : index
    %0 = vector.load %arg1[%c0, %c0_0] : memref<1x256xf32, #tpu.memory_space<vmem>>, vector<1x256xf32>
    %1 = arith.truncf %0 : vector<1x256xf32> to vector<1x256xbf16>
    %c0_1 = arith.constant 0 : index
    %c0_2 = arith.constant 0 : index
    %2 = vector.load %arg2[%c0_1, %c0_2] : memref<256x384xbf16, #tpu.memory_space<vmem>>, vector<256x384xbf16>
    %cst = arith.constant dense<0.000000e+00> : vector<1x384xf32>
    %3 = tpu.matmul %1, %2, %cst {dimension_numbers = #tpu.dot_dimension_numbers<[1], [0], [0], [1], [0, 0, 1, 1], [], []>} : vector<1x256xbf16>, vector<256x384xbf16>, vector<1x384xf32> -> vector<1x384xf32>
    %c0_3 = arith.constant 0 : index
    %c0_4 = arith.constant 0 : index
    %4 = vector.load %arg3[%c0_3, %c0_4] : memref<1x384xf32, #tpu.memory_space<vmem>>, vector<1x384xf32>
    %5 = arith.addf %3, %4 : vector<1x384xf32>
    %cst_5 = arith.constant 0.000000e+00 : f32
    %6 = vector.broadcast %cst_5 : f32 to vector<1x384xf32>
    %7 = arith.maximumf %5, %6 : vector<1x384xf32>
    %8 = arith.truncf %7 : vector<1x384xf32> to vector<1x384xbf16>
    %c0_6 = arith.constant 0 : index
    %c0_7 = arith.constant 0 : index
    %9 = vector.load %arg4[%c0_6, %c0_7] : memref<384x384xbf16, #tpu.memory_space<vmem>>, vector<384x384xbf16>
    %cst_8 = arith.constant dense<0.000000e+00> : vector<1x384xf32>
    %10 = tpu.matmul %8, %9, %cst_8 {dimension_numbers = #tpu.dot_dimension_numbers<[1], [0], [0], [1], [0, 0, 1, 1], [], []>} : vector<1x384xbf16>, vector<384x384xbf16>, vector<1x384xf32> -> vector<1x384xf32>
    %c0_9 = arith.constant 0 : index
    %c0_10 = arith.constant 0 : index
    %11 = vector.load %arg5[%c0_9, %c0_10] : memref<1x384xf32, #tpu.memory_space<vmem>>, vector<1x384xf32>
    %12 = arith.addf %10, %11 : vector<1x384xf32>
    %cst_11 = arith.constant 0.000000e+00 : f32
    %13 = vector.broadcast %cst_11 : f32 to vector<1x384xf32>
    %14 = arith.maximumf %12, %13 : vector<1x384xf32>
    %15 = arith.truncf %14 : vector<1x384xf32> to vector<1x384xbf16>
    %c0_12 = arith.constant 0 : index
    %c0_13 = arith.constant 0 : index
    %16 = vector.load %arg6[%c0_12, %c0_13] : memref<384x128xbf16, #tpu.memory_space<vmem>>, vector<384x128xbf16>
    %cst_14 = arith.constant dense<0.000000e+00> : vector<1x128xf32>
    %17 = tpu.matmul %15, %16, %cst_14 {dimension_numbers = #tpu.dot_dimension_numbers<[1], [0], [0], [1], [0, 0, 1, 1], [], []>} : vector<1x384xbf16>, vector<384x128xbf16>, vector<1x128xf32> -> vector<1x128xf32>
    %c0_15 = arith.constant 0 : index
    %c0_16 = arith.constant 0 : index
    %18 = vector.load %arg7[%c0_15, %c0_16] : memref<1x128xf32, #tpu.memory_space<vmem>>, vector<1x128xf32>
    %19 = arith.addf %17, %18 : vector<1x128xf32>
    %c0_17 = arith.constant 0 : index
    %c0_18 = arith.constant 0 : index
    %20 = vector.load %arg8[%c0_17, %c0_18] : memref<1x128xf32, #tpu.memory_space<vmem>>, vector<1x128xf32>
    tpu.vector_store %arg8[%c0_17, %c0_18], %19 {strides = array<i32>} : memref<1x128xf32, #tpu.memory_space<vmem>>, vector<1x128xf32>,
    return
  }
  func.func @transform_0(%arg0: i32) -> (i32, i32) {
    %c0_i32 = arith.constant 0 : i32
    %c0_i32_0 = arith.constant 0 : i32
    return %arg0, %c0_i32 : i32, i32
  }
  func.func @transform_1(%arg0: i32) -> (i32, i32) {
    %c0_i32 = arith.constant 0 : i32
    %c0_i32_0 = arith.constant 0 : i32
    %c0_i32_1 = arith.constant 0 : i32
    return %c0_i32, %c0_i32_0 : i32, i32
  }
  func.func @transform_2(%arg0: i32) -> (i32, i32) {
    %c0_i32 = arith.constant 0 : i32
    %c0_i32_0 = arith.constant 0 : i32
    %c0_i32_1 = arith.constant 0 : i32
    return %c0_i32, %c0_i32_0 : i32, i32
  }
  func.func @transform_3(%arg0: i32) -> (i32, i32) {
    %c0_i32 = arith.constant 0 : i32
    %c0_i32_0 = arith.constant 0 : i32
    %c0_i32_1 = arith.constant 0 : i32
    return %c0_i32, %c0_i32_0 : i32, i32
  }
  func.func @transform_4(%arg0: i32) -> (i32, i32) {
    %c0_i32 = arith.constant 0 : i32
    %c0_i32_0 = arith.constant 0 : i32
    %c0_i32_1 = arith.constant 0 : i32
    return %c0_i32, %c0_i32_0 : i32, i32
  }
  func.func @transform_5(%arg0: i32) -> (i32, i32) {
    %c0_i32 = arith.constant 0 : i32
    %c0_i32_0 = arith.constant 0 : i32
    %c0_i32_1 = arith.constant 0 : i32
    return %c0_i32, %c0_i32_0 : i32, i32
  }
  func.func @transform_6(%arg0: i32) -> (i32, i32) {
    %c0_i32 = arith.constant 0 : i32
    %c0_i32_0 = arith.constant 0 : i32
    %c0_i32_1 = arith.constant 0 : i32
    return %c0_i32, %c0_i32_0 : i32, i32
  }
  func.func @transform_7(%arg0: i32) -> (i32, i32) {
    %c0_i32 = arith.constant 0 : i32
    %c0_i32_0 = arith.constant 0 : i32
    return %arg0, %c0_i32 : i32, i32
  }
}

</mosaic_0001>

<llo_original>
// kernel: tpu_custom_call.1
$region0: #{tpu_custom_call.1}
  #allocation0 [shape = 'u32[]', space=smem, size = 0x4, offset = 0x4, fixed_abs, tag = 'smem constant byte address 0x4 - core index']
  #allocation1 [shape = 'u32[144,128]{1,0:T(1,128)}', space=vmem, size = 0x12000, scoped, tag = 'internal scratch']
  %s0 = inlined_call_operand.hbm [shape: f32[1,256], index: 0, kind: input, shape index: {}]
  %s1 = inlined_call_operand.hbm [shape: bf16[256,384], index: 1, kind: input, shape index: {}]
  %s2 = inlined_call_operand.vmem [shape: f32[1,384], index: 2, kind: input, shape index: {}]
  %s3 = inlined_call_operand.hbm [shape: bf16[384,384], index: 3, kind: input, shape index: {}]
  %s4 = inlined_call_operand.vmem [shape: f32[1,384], index: 4, kind: input, shape index: {}]
  %s5 = inlined_call_operand.hbm [shape: bf16[384,128], index: 5, kind: input, shape index: {}]
  %s6 = inlined_call_operand.vmem [shape: f32[1,128], index: 6, kind: input, shape index: {}]
  %s7 = inlined_call_operand.hbm [shape: f32[1,128], index: 7, kind: output, shape index: {}]
  %s8 = sld [smem:[#allocation0]]
  $region54: #{tpu_custom_call.1} parent=0
    _
  %s10 = ssub.s32 1, %s8
  %s11 = scalar_select 0, %s10, %s8
  $region1: #{tpu_custom_call.1} parent=0
    #allocation2 [shape = 'u8[1024]{0}', space=vmem, size = 0x400, scoped, tag = 'input window, operand 0, single buffered']
    #allocation3 [shape = 's32[1]{0}', space=sflag, size = 0x4, scoped, tag = 'scoped memory for tpu_custom_call.1']
    #allocation4 [shape = 's32[1]{0}', space=sflag, size = 0x4, scoped, tag = 'scoped memory for tpu_custom_call.1']
    #allocation5 [shape = 'u8[196608]{0}', space=vmem, size = 0x30000, scoped, tag = 'input window, operand 1, single buffered']
    #allocation6 [shape = 's32[1]{0}', space=sflag, size = 0x4, scoped, tag = 'scoped memory for tpu_custom_call.1']
    #allocation7 [shape = 'u8[294912]{0}', space=vmem, size = 0x48000, scoped, tag = 'input window, operand 3, single buffered']
    #allocation8 [shape = 'u8[98304]{0}', space=vmem, size = 0x18000, scoped, tag = 'input window, operand 5, single buffered']
    #allocation9 [shape = 's32[1]{0}', space=sflag, size = 0x4, scoped, tag = 'scoped memory for tpu_custom_call.1']
    #allocation10 [shape = 'u8[512]{0}', space=vmem, size = 0x400, scoped, tag = 'output window, operand 0, single buffered']
    %12 = vsyncpa [#allocation3], 0
    %13 = vsyncpa [#allocation6], 0
    %14 = vsyncpa [#allocation9], 0
    %15 = vsyncpa [#allocation4], 0
    // Predicated region
    $region2: #{tpu_custom_call.1} parent=1 // pred_check
      _
    $region3: #{tpu_custom_call.1} parent=1 // pred_check_branch
      %17 = sbr.rel (0) target = $region5
    $region4: #{tpu_custom_call.1} parent=1 // pred_region
      %s19 = ssub.s32 32, 32
      %20 = vsyncadd [#allocation3], %s19
      %s22 = sshll.u32 [#allocation2], 4
      %s23 = int_to_ptr.vmem [resolvable:$true] %s22
      %25 = dma.hbm_to_vmem [thread:$0]  %s0, 32, %s23, [#allocation3]
    $region5: #{tpu_custom_call.1} parent=1 // pred_fallthru
      _
    // Predicated region
    $region6: #{tpu_custom_call.1} parent=1 // pred_check
      _
    $region7: #{tpu_custom_call.1} parent=1 // pred_check_branch
      %27 = sbr.rel (0) target = $region9
    $region8: #{tpu_custom_call.1} parent=1 // pred_region
      %s29 = ssub.s32 6144, 6144
      %30 = vsyncadd [#allocation6], %s29
      %s31 = sshll.u32 [#allocation5], 4
      %s32 = int_to_ptr.vmem [resolvable:$true] %s31
      %37 = dma.hbm_to_vmem [thread:$0]  %s1, 6144, %s32, [#allocation6], 192, 192, 12
    $region9: #{tpu_custom_call.1} parent=1 // pred_fallthru
      _
    // Predicated region
    $region10: #{tpu_custom_call.1} parent=1 // pred_check
      _
    $region11: #{tpu_custom_call.1} parent=1 // pred_check_branch
      %39 = sbr.rel (0) target = $region13
    $region12: #{tpu_custom_call.1} parent=1 // pred_region
      _
    $region13: #{tpu_custom_call.1} parent=1 // pred_fallthru
      _
    // Predicated region
    $region14: #{tpu_custom_call.1} parent=1 // pred_check
      _
    $region15: #{tpu_custom_call.1} parent=1 // pred_check_branch
      %41 = sbr.rel (0) target = $region17
    $region16: #{tpu_custom_call.1} parent=1 // pred_region
      %s43 = ssub.s32 9216, 9216
      %44 = vsyncadd [#allocation6], %s43
      %s45 = sshll.u32 [#allocation7], 4
      %s46 = int_to_ptr.vmem [resolvable:$true] %s45
      %51 = dma.hbm_to_vmem [thread:$0]  %s3, 9216, %s46, [#allocation6], 192, 192, 12
    $region17: #{tpu_custom_call.1} parent=1 // pred_fallthru
      _
    // Predicated region
    $region18: #{tpu_custom_call.1} parent=1 // pred_check
      _
    $region19: #{tpu_custom_call.1} parent=1 // pred_check_branch
      %53 = sbr.rel (0) target = $region21
    $region20: #{tpu_custom_call.1} parent=1 // pred_region
      _
    $region21: #{tpu_custom_call.1} parent=1 // pred_fallthru
      _
    // Predicated region
    $region22: #{tpu_custom_call.1} parent=1 // pred_check
      _
    $region23: #{tpu_custom_call.1} parent=1 // pred_check_branch
      %55 = sbr.rel (0) target = $region25
    $region24: #{tpu_custom_call.1} parent=1 // pred_region
      %s57 = ssub.s32 3072, 3072
      %58 = vsyncadd [#allocation9], %s57
      %s59 = sshll.u32 [#allocation8], 4
      %s60 = int_to_ptr.vmem [resolvable:$true] %s59
      %65 = dma.hbm_to_vmem [thread:$0]  %s5, 3072, %s60, [#allocation9], 64, 64, 4
    $region25: #{tpu_custom_call.1} parent=1 // pred_fallthru
      _
    // Predicated region
    $region26: #{tpu_custom_call.1} parent=1 // pred_check
      _
    $region27: #{tpu_custom_call.1} parent=1 // pred_check_branch
      %67 = sbr.rel (0) target = $region29
    $region28: #{tpu_custom_call.1} parent=1 // pred_region
      _
    $region29: #{tpu_custom_call.1} parent=1 // pred_fallthru
      _
    // Predicated region
    $region30: #{tpu_custom_call.1} parent=1 // pred_check
      _
    $region31: #{tpu_custom_call.1} parent=1 // pred_check_branch
      %69 = sbr.rel (0) target = $region33
    $region32: #{tpu_custom_call.1} parent=1 // pred_region
      %70 = dma.done [#allocation3], 32
    $region33: #{tpu_custom_call.1} parent=1 // pred_fallthru
      _
    // Predicated region
    $region34: #{tpu_custom_call.1} parent=1 // pred_check
      _
    $region35: #{tpu_custom_call.1} parent=1 // pred_check_branch
      %72 = sbr.rel (0) target = $region37
    $region36: #{tpu_custom_call.1} parent=1 // pred_region
      %73 = dma.done [#allocation6], 6144
    $region37: #{tpu_custom_call.1} parent=1 // pred_fallthru
      _
    // Predicated region
    $region38: #{tpu_custom_call.1} parent=1 // pred_check
      _
    $region39: #{tpu_custom_call.1} parent=1 // pred_check_branch
      %75 = sbr.rel (0) target = $region41
    $region40: #{tpu_custom_call.1} parent=1 // pred_region
      %76 = dma.done [#allocation6], 9216
    $region41: #{tpu_custom_call.1} parent=1 // pred_fallthru
      _
    // Predicated region
    $region42: #{tpu_custom_call.1} parent=1 // pred_check
      _
    $region43: #{tpu_custom_call.1} parent=1 // pred_check_branch
      %78 = sbr.rel (0) target = $region45
    $region44: #{tpu_custom_call.1} parent=1 // pred_region
      %79 = dma.done [#allocation9], 3072
    $region45: #{tpu_custom_call.1} parent=1 // pred_fallthru
      _
    %v81 = vld [vmem:[#allocation2] sm:$0x3]
    %v83 = vlaneseq
    %v84 = vshrl.u32 %v83, 7
    %v85 = vsub.s32 0, %v84
    %v86 = vrot.slane %v81, %v85
    %v87 = vlaneseq
    %v88 = vshrl.u32 %v87, 7
    %v89 = vsub.s32 1, %v88
    %v90 = vrot.slane %v81, %v89
    %v93 = vpack.c.bf16 %v86, %v86
    %v94 = vpack.c.bf16 %v90, %v90
    %v95 = vld [vmem:[#allocation5] sm:$0xff]
    %v96 = vld [vmem:[#allocation5 + $0x8] sm:$0xf]
    %v97 = vld [vmem:[#allocation5 + $0xc] sm:$0xff]
    %v98 = vld [vmem:[#allocation5 + $0x14] sm:$0xf]
    %v99 = vld [vmem:[#allocation5 + $0x18] sm:$0xff]
    %v100 = vld [vmem:[#allocation5 + $0x20] sm:$0xf]
    %v101 = vld [vmem:[#allocation5 + $0x24] sm:$0xff]
    %v102 = vld [vmem:[#allocation5 + $0x2c] sm:$0xf]
    %v103 = vld [vmem:[#allocation5 + $0x30] sm:$0xff]
    %v104 = vld [vmem:[#allocation5 + $0x38] sm:$0xf]
    %v105 = vld [vmem:[#allocation5 + $0x3c] sm:$0xff]
    %v106 = vld [vmem:[#allocation5 + $0x44] sm:$0xf]
    %v107 = vld [vmem:[#allocation5 + $0x48] sm:$0xff]
    %v108 = vld [vmem:[#allocation5 + $0x50] sm:$0xf]
    %v109 = vld [vmem:[#allocation5 + $0x54] sm:$0xff]
    %v110 = vld [vmem:[#allocation5 + $0x5c] sm:$0xf]
    %v111 = vld [vmem:[#allocation5 + $0x60] sm:$0xff]
    %v112 = vld [vmem:[#allocation5 + $0x68] sm:$0xf]
    %v113 = vld [vmem:[#allocation5 + $0x6c] sm:$0xff]
    %v114 = vld [vmem:[#allocation5 + $0x74] sm:$0xf]
    %v115 = vld [vmem:[#allocation5 + $0x78] sm:$0xff]
    %v116 = vld [vmem:[#allocation5 + $0x80] sm:$0xf]
    %v117 = vld [vmem:[#allocation5 + $0x84] sm:$0xff]
    %v118 = vld [vmem:[#allocation5 + $0x8c] sm:$0xf]
    %v119 = vld [vmem:[#allocation5 + $0x90] sm:$0xff]
    %v120 = vld [vmem:[#allocation5 + $0x98] sm:$0xf]
    %v121 = vld [vmem:[#allocation5 + $0x9c] sm:$0xff]
    %v122 = vld [vmem:[#allocation5 + $0xa4] sm:$0xf]
    %v123 = vld [vmem:[#allocation5 + $0xa8] sm:$0xff]
    %v124 = vld [vmem:[#allocation5 + $0xb0] sm:$0xf]
    %v125 = vld [vmem:[#allocation5 + $0xb4] sm:$0xff]
    %v126 = vld [vmem:[#allocation5 + $0xbc] sm:$0xf]
    %v127 = vld [vmem:[#allocation5 + $0xc0] sm:$0xff]
    %v128 = vld [vmem:[#allocation5 + $0xc8] sm:$0xf]
    %v129 = vld [vmem:[#allocation5 + $0xcc] sm:$0xff]
    %v130 = vld [vmem:[#allocation5 + $0xd4] sm:$0xf]
    %v131 = vld [vmem:[#allocation5 + $0xd8] sm:$0xff]
    %v132 = vld [vmem:[#allocation5 + $0xe0] sm:$0xf]
    %v133 = vld [vmem:[#allocation5 + $0xe4] sm:$0xff]
    %v134 = vld [vmem:[#allocation5 + $0xec] sm:$0xf]
    %v135 = vld [vmem:[#allocation5 + $0xf0] sm:$0xff]
    %v136 = vld [vmem:[#allocation5 + $0xf8] sm:$0xf]
    %v137 = vld [vmem:[#allocation5 + $0xfc] sm:$0xff]
    %v138 = vld [vmem:[#allocation5 + $0x104] sm:$0xf]
    %v139 = vld [vmem:[#allocation5 + $0x108] sm:$0xff]
    %v140 = vld [vmem:[#allocation5 + $0x110] sm:$0xf]
    %v141 = vld [vmem:[#allocation5 + $0x114] sm:$0xff]
    %v142 = vld [vmem:[#allocation5 + $0x11c] sm:$0xf]
    %v143 = vld [vmem:[#allocation5 + $0x120] sm:$0xff]
    %v144 = vld [vmem:[#allocation5 + $0x128] sm:$0xf]
    %v145 = vld [vmem:[#allocation5 + $0x12c] sm:$0xff]
    %v146 = vld [vmem:[#allocation5 + $0x134] sm:$0xf]
    %v147 = vld [vmem:[#allocation5 + $0x138] sm:$0xff]
    %v148 = vld [vmem:[#allocation5 + $0x140] sm:$0xf]
    %v149 = vld [vmem:[#allocation5 + $0x144] sm:$0xff]
    %v150 = vld [vmem:[#allocation5 + $0x14c] sm:$0xf]
    %v151 = vld [vmem:[#allocation5 + $0x150] sm:$0xff]
    %v152 = vld [vmem:[#allocation5 + $0x158] sm:$0xf]
    %v153 = vld [vmem:[#allocation5 + $0x15c] sm:$0xff]
    %v154 = vld [vmem:[#allocation5 + $0x164] sm:$0xf]
    %v155 = vld [vmem:[#allocation5 + $0x168] sm:$0xff]
    %v156 = vld [vmem:[#allocation5 + $0x170] sm:$0xf]
    %v157 = vld [vmem:[#allocation5 + $0x174] sm:$0xff]
    %v158 = vld [vmem:[#allocation5 + $0x17c] sm:$0xf]
    %v159 = vld [vmem:[%s2] sm:$0x7]
    %v224 = vunpack.c.l.b16 %v95
    %v225 = vunpack.c.h.b16 %v95
    %v226 = vunpack.c.l.b16 %v96
    %v227 = vunpack.c.l.b16 %v97
    %v228 = vunpack.c.h.b16 %v97
    %v229 = vunpack.c.l.b16 %v98
    %v230 = vunpack.c.l.b16 %v99
    %v231 = vunpack.c.h.b16 %v99
    %v232 = vunpack.c.l.b16 %v100
    %v233 = vunpack.c.l.b16 %v101
    %v234 = vunpack.c.h.b16 %v101
    %v235 = vunpack.c.l.b16 %v102
    %v236 = vunpack.c.l.b16 %v103
    %v237 = vunpack.c.h.b16 %v103
    %v238 = vunpack.c.l.b16 %v104
    %v239 = vunpack.c.l.b16 %v105
    %v240 = vunpack.c.h.b16 %v105
    %v241 = vunpack.c.l.b16 %v106
    %v242 = vunpack.c.l.b16 %v107
    %v243 = vunpack.c.h.b16 %v107
    %v244 = vunpack.c.l.b16 %v108
    %v245 = vunpack.c.l.b16 %v109
    %v246 = vunpack.c.h.b16 %v109
    %v247 = vunpack.c.l.b16 %v110
    %v248 = vunpack.c.l.b16 %v111
    %v249 = vunpack.c.h.b16 %v111
    %v250 = vunpack.c.l.b16 %v112
    %v251 = vunpack.c.l.b16 %v113
    %v252 = vunpack.c.h.b16 %v113
    %v253 = vunpack.c.l.b16 %v114
    %v254 = vunpack.c.l.b16 %v115
    %v255 = vunpack.c.h.b16 %v115
    %v256 = vunpack.c.l.b16 %v116
    %v257 = vunpack.c.l.b16 %v117
    %v258 = vunpack.c.h.b16 %v117
    %v259 = vunpack.c.l.b16 %v118
    %v260 = vunpack.c.l.b16 %v119
    %v261 = vunpack.c.h.b16 %v119
    %v262 = vunpack.c.l.b16 %v120
    %v263 = vunpack.c.l.b16 %v121
    %v264 = vunpack.c.h.b16 %v121
    %v265 = vunpack.c.l.b16 %v122
    %v266 = vunpack.c.l.b16 %v123
    %v267 = vunpack.c.h.b16 %v123
    %v268 = vunpack.c.l.b16 %v124
    %v269 = vunpack.c.l.b16 %v125
    %v270 = vunpack.c.h.b16 %v125
    %v271 = vunpack.c.l.b16 %v126
    %v272 = vunpack.c.l.b16 %v127
    %v273 = vunpack.c.h.b16 %v127
    %v274 = vunpack.c.l.b16 %v128
    %v275 = vunpack.c.l.b16 %v129
    %v276 = vunpack.c.h.b16 %v129
    %v277 = vunpack.c.l.b16 %v130
    %v278 = vunpack.c.l.b16 %v131
    %v279 = vunpack.c.h.b16 %v131
    %v280 = vunpack.c.l.b16 %v132
    %v281 = vunpack.c.l.b16 %v133
    %v282 = vunpack.c.h.b16 %v133
    %v283 = vunpack.c.l.b16 %v134
    %v284 = vunpack.c.l.b16 %v135
    %v285 = vunpack.c.h.b16 %v135
    %v286 = vunpack.c.l.b16 %v136
    %v287 = vunpack.c.l.b16 %v137
    %v288 = vunpack.c.h.b16 %v137
    %v289 = vunpack.c.l.b16 %v138
    %v290 = vunpack.c.l.b16 %v139
    %v291 = vunpack.c.h.b16 %v139
    %v292 = vunpack.c.l.b16 %v140
    %v293 = vunpack.c.l.b16 %v141
    %v294 = vunpack.c.h.b16 %v141
    %v295 = vunpack.c.l.b16 %v142
    %v296 = vunpack.c.l.b16 %v143
    %v297 = vunpack.c.h.b16 %v143
    %v298 = vunpack.c.l.b16 %v144
    %v299 = vunpack.c.l.b16 %v145
    %v300 = vunpack.c.h.b16 %v145
    %v301 = vunpack.c.l.b16 %v146
    %v302 = vunpack.c.l.b16 %v147
    %v303 = vunpack.c.h.b16 %v147
    %v304 = vunpack.c.l.b16 %v148
    %v305 = vunpack.c.l.b16 %v149
    %v306 = vunpack.c.h.b16 %v149
    %v307 = vunpack.c.l.b16 %v150
    %v308 = vunpack.c.l.b16 %v151
    %v309 = vunpack.c.h.b16 %v151
    %v310 = vunpack.c.l.b16 %v152
    %v311 = vunpack.c.l.b16 %v153
    %v312 = vunpack.c.h.b16 %v153
    %v313 = vunpack.c.l.b16 %v154
    %v314 = vunpack.c.l.b16 %v155
    %v315 = vunpack.c.h.b16 %v155
    %v316 = vunpack.c.l.b16 %v156
    %v317 = vunpack.c.l.b16 %v157
    %v318 = vunpack.c.h.b16 %v157
    %v319 = vunpack.c.l.b16 %v158
    %v320 = vpack.c.b16 %v227, %v224
    %v321 = vpack.c.b16 %v228, %v225
    %v322 = vpack.c.b16 %v229, %v226
    %v323 = vpack.c.b16 %v233, %v230
    %v324 = vpack.c.b16 %v234, %v231
    %v325 = vpack.c.b16 %v235, %v232
    %v326 = vpack.c.b16 %v239, %v236
    %v327 = vpack.c.b16 %v240, %v237
    %v328 = vpack.c.b16 %v241, %v238
    %v329 = vpack.c.b16 %v245, %v242
    %v330 = vpack.c.b16 %v246, %v243
    %v331 = vpack.c.b16 %v247, %v244
    %v332 = vpack.c.b16 %v251, %v248
    %v333 = vpack.c.b16 %v252, %v249
    %v334 = vpack.c.b16 %v253, %v250
    %v335 = vpack.c.b16 %v257, %v254
    %v336 = vpack.c.b16 %v258, %v255
    %v337 = vpack.c.b16 %v259, %v256
    %v338 = vpack.c.b16 %v263, %v260
    %v339 = vpack.c.b16 %v264, %v261
    %v340 = vpack.c.b16 %v265, %v262
    %v341 = vpack.c.b16 %v269, %v266
    %v342 = vpack.c.b16 %v270, %v267
    %v343 = vpack.c.b16 %v271, %v268
    %v344 = vpack.c.b16 %v275, %v272
    %v345 = vpack.c.b16 %v276, %v273
    %v346 = vpack.c.b16 %v277, %v274
    %v347 = vpack.c.b16 %v281, %v278
    %v348 = vpack.c.b16 %v282, %v279
    %v349 = vpack.c.b16 %v283, %v280
    %v350 = vpack.c.b16 %v287, %v284
    %v351 = vpack.c.b16 %v288, %v285
    %v352 = vpack.c.b16 %v289, %v286
    %v353 = vpack.c.b16 %v293, %v290
    %v354 = vpack.c.b16 %v294, %v291
    %v355 = vpack.c.b16 %v295, %v292
    %v356 = vpack.c.b16 %v299, %v296
    %v357 = vpack.c.b16 %v300, %v297
    %v358 = vpack.c.b16 %v301, %v298
    %v359 = vpack.c.b16 %v305, %v302
    %v360 = vpack.c.b16 %v306, %v303
    %v361 = vpack.c.b16 %v307, %v304
    %v362 = vpack.c.b16 %v311, %v308
    %v363 = vpack.c.b16 %v312, %v309
    %v364 = vpack.c.b16 %v313, %v310
    %v365 = vpack.c.b16 %v317, %v314
    %v366 = vpack.c.b16 %v318, %v315
    %v367 = vpack.c.b16 %v319, %v316
    %v417 = vlaneseq
    %v418 = vshrl.u32 %v417, 7
    %v419 = vsub.s32 0, %v418
    %v420 = vrot.slane %v159, %v419
    %v421 = vlaneseq
    %v422 = vshrl.u32 %v421, 7
    %v423 = vsub.s32 1, %v422
    %v424 = vrot.slane %v159, %v423
    %v425 = vlaneseq
    %v426 = vshrl.u32 %v425, 7
    %v427 = vsub.s32 2, %v426
    %v428 = vrot.slane %v159, %v427
    %432 = vmatprep.subr.bf16.mxu0 %v321
    %433 = vmatpush1.bf16.msra.mxu0 %v320
    %434 = vmatprep.subr.bf16.mxu0 %v324
    %435 = vmatpush1.bf16.msra.mxu0 %v323
    %436 = vmatprep.subr.bf16.mxu0 %v327
    %437 = vmatpush1.bf16.msra.mxu0 %v326
    %438 = vmatprep.subr.bf16.mxu0 %v330
    %439 = vmatpush1.bf16.msra.mxu0 %v329
    %440 = vmatprep.subr.bf16.mxu0 %v333
    %441 = vmatpush1.bf16.msra.mxu0 %v332
    %442 = vmatprep.subr.bf16.mxu0 %v336
    %443 = vmatpush1.bf16.msra.mxu0 %v335
    %444 = vmatprep.subr.bf16.mxu0 %v339
    %445 = vmatpush1.bf16.msra.mxu0 %v338
    %446 = vmatprep.subr.bf16.mxu0 %v342
    %447 = vmatpush1.bf16.msra.mxu0 %v341
    %448 = vmatprep.subr.bf16.mxu0 %v345
    %449 = vmatpush1.bf16.msra.mxu0 %v344
    %450 = vmatprep.subr.bf16.mxu0 %v348
    %451 = vmatpush1.bf16.msra.mxu0 %v347
    %452 = vmatprep.subr.bf16.mxu0 %v351
    %453 = vmatpush1.bf16.msra.mxu0 %v350
    %454 = vmatprep.subr.bf16.mxu0 %v354
    %455 = vmatpush1.bf16.msra.mxu0 %v353
    %456 = vmatprep.subr.bf16.mxu0 %v357
    %457 = vmatpush1.bf16.msra.mxu0 %v356
    %458 = vmatprep.subr.bf16.mxu0 %v360
    %459 = vmatpush1.bf16.msra.mxu0 %v359
    %460 = vmatprep.subr.bf16.mxu0 %v363
    %461 = vmatpush1.bf16.msra.mxu0 %v362
    %462 = vmatprep.subr.bf16.mxu0 %v366
    %463 = vmatpush1.bf16.msra.mxu0 %v365
    %464 = vmatprep.mubr.bf16.mxu0 %v94
    %465 = vmatmul.mubr.bf16.gmra.mrb[0].mxu0 %v93
    %v466 = vpop.f32.mrb[0].mxu0
    %v467 = vadd.f32 %v420, %v466
    %v468 = vpop.f32.mrb[0].mxu0
    %v469 = vadd.f32 %v424, %v468
    %v470 = vpop.f32.mrb[0].mxu0
    %v471 = vpop.f32.mrb[0].mxu0
    %472 = vdwg.mxu0
    %473 = vmatprep.subr.bf16.mxu0 0
    %474 = vmatpush1.bf16.msra.mxu0 %v322
    %475 = vmatprep.subr.bf16.mxu0 0
    %476 = vmatpush1.bf16.msra.mxu0 %v325
    %477 = vmatprep.subr.bf16.mxu0 0
    %478 = vmatpush1.bf16.msra.mxu0 %v328
    %479 = vmatprep.subr.bf16.mxu0 0
    %480 = vmatpush1.bf16.msra.mxu0 %v331
    %481 = vmatprep.subr.bf16.mxu0 0
    %482 = vmatpush1.bf16.msra.mxu0 %v334
    %483 = vmatprep.subr.bf16.mxu0 0
    %484 = vmatpush1.bf16.msra.mxu0 %v337
    %485 = vmatprep.subr.bf16.mxu0 0
    %486 = vmatpush1.bf16.msra.mxu0 %v340
    %487 = vmatprep.subr.bf16.mxu0 0
    %488 = vmatpush1.bf16.msra.mxu0 %v343
    %489 = vmatprep.subr.bf16.mxu0 0
    %490 = vmatpush1.bf16.msra.mxu0 %v346
    %491 = vmatprep.subr.bf16.mxu0 0
    %492 = vmatpush1.bf16.msra.mxu0 %v349
    %493 = vmatprep.subr.bf16.mxu0 0
    %494 = vmatpush1.bf16.msra.mxu0 %v352
    %495 = vmatprep.subr.bf16.mxu0 0
    %496 = vmatpush1.bf16.msra.mxu0 %v355
    %497 = vmatprep.subr.bf16.mxu0 0
    %498 = vmatpush1.bf16.msra.mxu0 %v358
    %499 = vmatprep.subr.bf16.mxu0 0
    %500 = vmatpush1.bf16.msra.mxu0 %v361
    %501 = vmatprep.subr.bf16.mxu0 0
    %502 = vmatpush1.bf16.msra.mxu0 %v364
    %503 = vmatprep.subr.bf16.mxu0 0
    %504 = vmatpush1.bf16.msra.mxu0 %v367
    %505 = vmatprep.mubr.bf16.mxu0 %v94
    %506 = vmatmul.mubr.bf16.gmra.mrb[0].mxu0 %v93
    %v507 = vpop.f32.mrb[0].mxu0
    %v508 = vadd.f32 %v428, %v507
    %v509 = vpop.f32.mrb[0].mxu0
    %v510 = vpop.f32.mrb[0].mxu0
    %v511 = vpop.f32.mrb[0].mxu0
    %512 = vdwg.mxu0
    %v513 = vmax.f32 %v467, 0.0
    %v514 = vmax.f32 %v469, 0.0
    %v515 = vmax.f32 %v508, 0.0
    %v516 = vpack.c.bf16 %v513, %v513
    %v517 = vpack.c.bf16 %v514, %v514
    %v518 = vpack.c.bf16 %v515, %v515
    %v519 = vld [vmem:[#allocation7] sm:$0xff]
    %v520 = vld [vmem:[#allocation7 + $0x8] sm:$0xf]
    %v521 = vld [vmem:[#allocation7 + $0xc] sm:$0xff]
    %v522 = vld [vmem:[#allocation7 + $0x14] sm:$0xf]
    %v523 = vld [vmem:[#allocation7 + $0x18] sm:$0xff]
    %v524 = vld [vmem:[#allocation7 + $0x20] sm:$0xf]
    %v525 = vld [vmem:[#allocation7 + $0x24] sm:$0xff]
    %v526 = vld [vmem:[#allocation7 + $0x2c] sm:$0xf]
    %v527 = vld [vmem:[#allocation7 + $0x30] sm:$0xff]
    %v528 = vld [vmem:[#allocation7 + $0x38] sm:$0xf]
    %v529 = vld [vmem:[#allocation7 + $0x3c] sm:$0xff]
    %v530 = vld [vmem:[#allocation7 + $0x44] sm:$0xf]
    %v531 = vld [vmem:[#allocation7 + $0x48] sm:$0xff]
    %v532 = vld [vmem:[#allocation7 + $0x50] sm:$0xf]
    %v533 = vld [vmem:[#allocation7 + $0x54] sm:$0xff]
    %v534 = vld [vmem:[#allocation7 + $0x5c] sm:$0xf]
    %v535 = vld [vmem:[#allocation7 + $0x60] sm:$0xff]
    %v536 = vld [vmem:[#allocation7 + $0x68] sm:$0xf]
    %v537 = vld [vmem:[#allocation7 + $0x6c] sm:$0xff]
    %v538 = vld [vmem:[#allocation7 + $0x74] sm:$0xf]
    %v539 = vld [vmem:[#allocation7 + $0x78] sm:$0xff]
    %v540 = vld [vmem:[#allocation7 + $0x80] sm:$0xf]
    %v541 = vld [vmem:[#allocation7 + $0x84] sm:$0xff]
    %v542 = vld [vmem:[#allocation7 + $0x8c] sm:$0xf]
    %v543 = vld [vmem:[#allocation7 + $0x90] sm:$0xff]
    %v544 = vld [vmem:[#allocation7 + $0x98] sm:$0xf]
    %v545 = vld [vmem:[#allocation7 + $0x9c] sm:$0xff]
    %v546 = vld [vmem:[#allocation7 + $0xa4] sm:$0xf]
    %v547 = vld [vmem:[#allocation7 + $0xa8] sm:$0xff]
    %v548 = vld [vmem:[#allocation7 + $0xb0] sm:$0xf]
    %v549 = vld [vmem:[#allocation7 + $0xb4] sm:$0xff]
    %v550 = vld [vmem:[#allocation7 + $0xbc] sm:$0xf]
    %v551 = vld [vmem:[#allocation7 + $0xc0] sm:$0xff]
    %v552 = vld [vmem:[#allocation7 + $0xc8] sm:$0xf]
    %v553 = vld [vmem:[#allocation7 + $0xcc] sm:$0xff]
    %v554 = vld [vmem:[#allocation7 + $0xd4] sm:$0xf]
    %v555 = vld [vmem:[#allocation7 + $0xd8] sm:$0xff]
    %v556 = vld [vmem:[#allocation7 + $0xe0] sm:$0xf]
    %v557 = vld [vmem:[#allocation7 + $0xe4] sm:$0xff]
    %v558 = vld [vmem:[#allocation7 + $0xec] sm:$0xf]
    %v559 = vld [vmem:[#allocation7 + $0xf0] sm:$0xff]
    %v560 = vld [vmem:[#allocation7 + $0xf8] sm:$0xf]
    %v561 = vld [vmem:[#allocation7 + $0xfc] sm:$0xff]
    %v562 = vld [vmem:[#allocation7 + $0x104] sm:$0xf]
    %v563 = vld [vmem:[#allocation7 + $0x108] sm:$0xff]
    %v564 = vld [vmem:[#allocation7 + $0x110] sm:$0xf]
    %v565 = vld [vmem:[#allocation7 + $0x114] sm:$0xff]
    %v566 = vld [vmem:[#allocation7 + $0x11c] sm:$0xf]
    %v567 = vld [vmem:[#allocation7 + $0x120] sm:$0xff]
    %v568 = vld [vmem:[#allocation7 + $0x128] sm:$0xf]
    %v569 = vld [vmem:[#allocation7 + $0x12c] sm:$0xff]
    %v570 = vld [vmem:[#allocation7 + $0x134] sm:$0xf]
    %v571 = vld [vmem:[#allocation7 + $0x138] sm:$0xff]
    %v572 = vld [vmem:[#allocation7 + $0x140] sm:$0xf]
    %v573 = vld [vmem:[#allocation7 + $0x144] sm:$0xff]
    %v574 = vld [vmem:[#allocation7 + $0x14c] sm:$0xf]
    %v575 = vld [vmem:[#allocation7 + $0x150] sm:$0xff]
    %v576 = vld [vmem:[#allocation7 + $0x158] sm:$0xf]
    %v577 = vld [vmem:[#allocation7 + $0x15c] sm:$0xff]
    %v578 = vld [vmem:[#allocation7 + $0x164] sm:$0xf]
    %v579 = vld [vmem:[#allocation7 + $0x168] sm:$0xff]
    %v580 = vld [vmem:[#allocation7 + $0x170] sm:$0xf]
    %v581 = vld [vmem:[#allocation7 + $0x174] sm:$0xff]
    %v582 = vld [vmem:[#allocation7 + $0x17c] sm:$0xf]
    %v583 = vld [vmem:[#allocation7 + $0x180] sm:$0xff]
    %v584 = vld [vmem:[#allocation7 + $0x188] sm:$0xf]
    %v585 = vld [vmem:[#allocation7 + $0x18c] sm:$0xff]
    %v586 = vld [vmem:[#allocation7 + $0x194] sm:$0xf]
    %v587 = vld [vmem:[#allocation7 + $0x198] sm:$0xff]
    %v588 = vld [vmem:[#allocation7 + $0x1a0] sm:$0xf]
    %v589 = vld [vmem:[#allocation7 + $0x1a4] sm:$0xff]
    %v590 = vld [vmem:[#allocation7 + $0x1ac] sm:$0xf]
    %v591 = vld [vmem:[#allocation7 + $0x1b0] sm:$0xff]
    %v592 = vld [vmem:[#allocation7 + $0x1b8] sm:$0xf]
    %v593 = vld [vmem:[#allocation7 + $0x1bc] sm:$0xff]
    %v594 = vld [vmem:[#allocation7 + $0x1c4] sm:$0xf]
    %v595 = vld [vmem:[#allocation7 + $0x1c8] sm:$0xff]
    %v596 = vld [vmem:[#allocation7 + $0x1d0] sm:$0xf]
    %v597 = vld [vmem:[#allocation7 + $0x1d4] sm:$0xff]
    %v598 = vld [vmem:[#allocation7 + $0x1dc] sm:$0xf]
    %v599 = vld [vmem:[#allocation7 + $0x1e0] sm:$0xff]
    %v600 = vld [vmem:[#allocation7 + $0x1e8] sm:$0xf]
    %v601 = vld [vmem:[#allocation7 + $0x1ec] sm:$0xff]
    %v602 = vld [vmem:[#allocation7 + $0x1f4] sm:$0xf]
    %v603 = vld [vmem:[#allocation7 + $0x1f8] sm:$0xff]
    %v604 = vld [vmem:[#allocation7 + $0x200] sm:$0xf]
    %v605 = vld [vmem:[#allocation7 + $0x204] sm:$0xff]
    %v606 = vld [vmem:[#allocation7 + $0x20c] sm:$0xf]
    %v607 = vld [vmem:[#allocation7 + $0x210] sm:$0xff]
    %v608 = vld [vmem:[#allocation7 + $0x218] sm:$0xf]
    %v609 = vld [vmem:[#allocation7 + $0x21c] sm:$0xff]
    %v610 = vld [vmem:[#allocation7 + $0x224] sm:$0xf]
    %v611 = vld [vmem:[#allocation7 + $0x228] sm:$0xff]
    %v612 = vld [vmem:[#allocation7 + $0x230] sm:$0xf]
    %v613 = vld [vmem:[#allocation7 + $0x234] sm:$0xff]
    %v614 = vld [vmem:[#allocation7 + $0x23c] sm:$0xf]
    %v615 = vld [vmem:[%s4] sm:$0x7]
    %v712 = vunpack.c.l.b16 %v519
    %v713 = vunpack.c.h.b16 %v519
    %v714 = vunpack.c.l.b16 %v520
    %v715 = vunpack.c.l.b16 %v521
    %v716 = vunpack.c.h.b16 %v521
    %v717 = vunpack.c.l.b16 %v522
    %v718 = vunpack.c.l.b16 %v523
    %v719 = vunpack.c.h.b16 %v523
    %v720 = vunpack.c.l.b16 %v524
    %v721 = vunpack.c.l.b16 %v525
    %v722 = vunpack.c.h.b16 %v525
    %v723 = vunpack.c.l.b16 %v526
    %v724 = vunpack.c.l.b16 %v527
    %v725 = vunpack.c.h.b16 %v527
    %v726 = vunpack.c.l.b16 %v528
    %v727 = vunpack.c.l.b16 %v529
    %v728 = vunpack.c.h.b16 %v529
    %v729 = vunpack.c.l.b16 %v530
    %v730 = vunpack.c.l.b16 %v531
    %v731 = vunpack.c.h.b16 %v531
    %v732 = vunpack.c.l.b16 %v532
    %v733 = vunpack.c.l.b16 %v533
    %v734 = vunpack.c.h.b16 %v533
    %v735 = vunpack.c.l.b16 %v534
    %v736 = vunpack.c.l.b16 %v535
    %v737 = vunpack.c.h.b16 %v535
    %v738 = vunpack.c.l.b16 %v536
    %v739 = vunpack.c.l.b16 %v537
    %v740 = vunpack.c.h.b16 %v537
    %v741 = vunpack.c.l.b16 %v538
    %v742 = vunpack.c.l.b16 %v539
    %v743 = vunpack.c.h.b16 %v539
    %v744 = vunpack.c.l.b16 %v540
    %v745 = vunpack.c.l.b16 %v541
    %v746 = vunpack.c.h.b16 %v541
    %v747 = vunpack.c.l.b16 %v542
    %v748 = vunpack.c.l.b16 %v543
    %v749 = vunpack.c.h.b16 %v543
    %v750 = vunpack.c.l.b16 %v544
    %v751 = vunpack.c.l.b16 %v545
    %v752 = vunpack.c.h.b16 %v545
    %v753 = vunpack.c.l.b16 %v546
    %v754 = vunpack.c.l.b16 %v547
    %v755 = vunpack.c.h.b16 %v547
    %v756 = vunpack.c.l.b16 %v548
    %v757 = vunpack.c.l.b16 %v549
    %v758 = vunpack.c.h.b16 %v549
    %v759 = vunpack.c.l.b16 %v550
    %v760 = vunpack.c.l.b16 %v551
    %v761 = vunpack.c.h.b16 %v551
    %v762 = vunpack.c.l.b16 %v552
    %v763 = vunpack.c.l.b16 %v553
    %v764 = vunpack.c.h.b16 %v553
    %v765 = vunpack.c.l.b16 %v554
    %v766 = vunpack.c.l.b16 %v555
    %v767 = vunpack.c.h.b16 %v555
    %v768 = vunpack.c.l.b16 %v556
    %v769 = vunpack.c.l.b16 %v557
    %v770 = vunpack.c.h.b16 %v557
    %v771 = vunpack.c.l.b16 %v558
    %v772 = vunpack.c.l.b16 %v559
    %v773 = vunpack.c.h.b16 %v559
    %v774 = vunpack.c.l.b16 %v560
    %v775 = vunpack.c.l.b16 %v561
    %v776 = vunpack.c.h.b16 %v561
    %v777 = vunpack.c.l.b16 %v562
    %v778 = vunpack.c.l.b16 %v563
    %v779 = vunpack.c.h.b16 %v563
    %v780 = vunpack.c.l.b16 %v564
    %v781 = vunpack.c.l.b16 %v565
    %v782 = vunpack.c.h.b16 %v565
    %v783 = vunpack.c.l.b16 %v566
    %v784 = vunpack.c.l.b16 %v567
    %v785 = vunpack.c.h.b16 %v567
    %v786 = vunpack.c.l.b16 %v568
    %v787 = vunpack.c.l.b16 %v569
    %v788 = vunpack.c.h.b16 %v569
    %v789 = vunpack.c.l.b16 %v570
    %v790 = vunpack.c.l.b16 %v571
    %v791 = vunpack.c.h.b16 %v571
    %v792 = vunpack.c.l.b16 %v572
    %v793 = vunpack.c.l.b16 %v573
    %v794 = vunpack.c.h.b16 %v573
    %v795 = vunpack.c.l.b16 %v574
    %v796 = vunpack.c.l.b16 %v575
    %v797 = vunpack.c.h.b16 %v575
    %v798 = vunpack.c.l.b16 %v576
    %v799 = vunpack.c.l.b16 %v577
    %v800 = vunpack.c.h.b16 %v577
    %v801 = vunpack.c.l.b16 %v578
    %v802 = vunpack.c.l.b16 %v579
    %v803 = vunpack.c.h.b16 %v579
    %v804 = vunpack.c.l.b16 %v580
    %v805 = vunpack.c.l.b16 %v581
    %v806 = vunpack.c.h.b16 %v581
    %v807 = vunpack.c.l.b16 %v582
    %v808 = vunpack.c.l.b16 %v583
    %v809 = vunpack.c.h.b16 %v583
    %v810 = vunpack.c.l.b16 %v584
    %v811 = vunpack.c.l.b16 %v585
    %v812 = vunpack.c.h.b16 %v585
    %v813 = vunpack.c.l.b16 %v586
    %v814 = vunpack.c.l.b16 %v587
    %v815 = vunpack.c.h.b16 %v587
    %v816 = vunpack.c.l.b16 %v588
    %v817 = vunpack.c.l.b16 %v589
    %v818 = vunpack.c.h.b16 %v589
    %v819 = vunpack.c.l.b16 %v590
    %v820 = vunpack.c.l.b16 %v591
    %v821 = vunpack.c.h.b16 %v591
    %v822 = vunpack.c.l.b16 %v592
    %v823 = vunpack.c.l.b16 %v593
    %v824 = vunpack.c.h.b16 %v593
    %v825 = vunpack.c.l.b16 %v594
    %v826 = vunpack.c.l.b16 %v595
    %v827 = vunpack.c.h.b16 %v595
    %v828 = vunpack.c.l.b16 %v596
    %v829 = vunpack.c.l.b16 %v597
    %v830 = vunpack.c.h.b16 %v597
    %v831 = vunpack.c.l.b16 %v598
    %v832 = vunpack.c.l.b16 %v599
    %v833 = vunpack.c.h.b16 %v599
    %v834 = vunpack.c.l.b16 %v600
    %v835 = vunpack.c.l.b16 %v601
    %v836 = vunpack.c.h.b16 %v601
    %v837 = vunpack.c.l.b16 %v602
    %v838 = vunpack.c.l.b16 %v603
    %v839 = vunpack.c.h.b16 %v603
    %v840 = vunpack.c.l.b16 %v604
    %v841 = vunpack.c.l.b16 %v605
    %v842 = vunpack.c.h.b16 %v605
    %v843 = vunpack.c.l.b16 %v606
    %v844 = vunpack.c.l.b16 %v607
    %v845 = vunpack.c.h.b16 %v607
    %v846 = vunpack.c.l.b16 %v608
    %v847 = vunpack.c.l.b16 %v609
    %v848 = vunpack.c.h.b16 %v609
    %v849 = vunpack.c.l.b16 %v610
    %v850 = vunpack.c.l.b16 %v611
    %v851 = vunpack.c.h.b16 %v611
    %v852 = vunpack.c.l.b16 %v612
    %v853 = vunpack.c.l.b16 %v613
    %v854 = vunpack.c.h.b16 %v613
    %v855 = vunpack.c.l.b16 %v614
    %v856 = vpack.c.b16 %v715, %v712
    %v857 = vpack.c.b16 %v716, %v713
    %v858 = vpack.c.b16 %v717, %v714
    %v859 = vpack.c.b16 %v721, %v718
    %v860 = vpack.c.b16 %v722, %v719
    %v861 = vpack.c.b16 %v723, %v720
    %v862 = vpack.c.b16 %v727, %v724
    %v863 = vpack.c.b16 %v728, %v725
    %v864 = vpack.c.b16 %v729, %v726
    %v865 = vpack.c.b16 %v733, %v730
    %v866 = vpack.c.b16 %v734, %v731
    %v867 = vpack.c.b16 %v735, %v732
    %v868 = vpack.c.b16 %v739, %v736
    %v869 = vpack.c.b16 %v740, %v737
    %v870 = vpack.c.b16 %v741, %v738
    %v871 = vpack.c.b16 %v745, %v742
    %v872 = vpack.c.b16 %v746, %v743
    %v873 = vpack.c.b16 %v747, %v744
    %v874 = vpack.c.b16 %v751, %v748
    %v875 = vpack.c.b16 %v752, %v749
    %v876 = vpack.c.b16 %v753, %v750
    %v877 = vpack.c.b16 %v757, %v754
    %v878 = vpack.c.b16 %v758, %v755
    %v879 = vpack.c.b16 %v759, %v756
    %v880 = vpack.c.b16 %v763, %v760
    %v881 = vpack.c.b16 %v764, %v761
    %v882 = vpack.c.b16 %v765, %v762
    %v883 = vpack.c.b16 %v769, %v766
    %v884 = vpack.c.b16 %v770, %v767
    %v885 = vpack.c.b16 %v771, %v768
    %v886 = vpack.c.b16 %v775, %v772
    %v887 = vpack.c.b16 %v776, %v773
    %v888 = vpack.c.b16 %v777, %v774
    %v889 = vpack.c.b16 %v781, %v778
    %v890 = vpack.c.b16 %v782, %v779
    %v891 = vpack.c.b16 %v783, %v780
    %v892 = vpack.c.b16 %v787, %v784
    %v893 = vpack.c.b16 %v788, %v785
    %v894 = vpack.c.b16 %v789, %v786
    %v895 = vpack.c.b16 %v793, %v790
    %v896 = vpack.c.b16 %v794, %v791
    %v897 = vpack.c.b16 %v795, %v792
    %v898 = vpack.c.b16 %v799, %v796
    %v899 = vpack.c.b16 %v800, %v797
    %v900 = vpack.c.b16 %v801, %v798
    %v901 = vpack.c.b16 %v805, %v802
    %v902 = vpack.c.b16 %v806, %v803
    %v903 = vpack.c.b16 %v807, %v804
    %v904 = vpack.c.b16 %v811, %v808
    %v905 = vpack.c.b16 %v812, %v809
    %v906 = vpack.c.b16 %v813, %v810
    %v907 = vpack.c.b16 %v817, %v814
    %v908 = vpack.c.b16 %v818, %v815
    %v909 = vpack.c.b16 %v819, %v816
    %v910 = vpack.c.b16 %v823, %v820
    %v911 = vpack.c.b16 %v824, %v821
    %v912 = vpack.c.b16 %v825, %v822
    %v913 = vpack.c.b16 %v829, %v826
    %v914 = vpack.c.b16 %v830, %v827
    %v915 = vpack.c.b16 %v831, %v828
    %v916 = vpack.c.b16 %v835, %v832
    %v917 = vpack.c.b16 %v836, %v833
    %v918 = vpack.c.b16 %v837, %v834
    %v919 = vpack.c.b16 %v841, %v838
    %v920 = vpack.c.b16 %v842, %v839
    %v921 = vpack.c.b16 %v843, %v840
    %v922 = vpack.c.b16 %v847, %v844
    %v923 = vpack.c.b16 %v848, %v845
    %v924 = vpack.c.b16 %v849, %v846
    %v925 = vpack.c.b16 %v853, %v850
    %v926 = vpack.c.b16 %v854, %v851
    %v927 = vpack.c.b16 %v855, %v852
    %v1001 = vlaneseq
    %v1002 = vshrl.u32 %v1001, 7
    %v1003 = vsub.s32 0, %v1002
    %v1004 = vrot.slane %v615, %v1003
    %v1005 = vlaneseq
    %v1006 = vshrl.u32 %v1005, 7
    %v1007 = vsub.s32 1, %v1006
    %v1008 = vrot.slane %v615, %v1007
    %v1009 = vlaneseq
    %v1010 = vshrl.u32 %v1009, 7
    %v1011 = vsub.s32 2, %v1010
    %v1012 = vrot.slane %v615, %v1011
    %1016 = vmatprep.subr.bf16.mxu0 %v857
    %1017 = vmatpush1.bf16.msra.mxu0 %v856
    %1018 = vmatprep.subr.bf16.mxu0 %v860
    %1019 = vmatpush1.bf16.msra.mxu0 %v859
    %1020 = vmatprep.subr.bf16.mxu0 %v863
    %1021 = vmatpush1.bf16.msra.mxu0 %v862
    %1022 = vmatprep.subr.bf16.mxu0 %v866
    %1023 = vmatpush1.bf16.msra.mxu0 %v865
    %1024 = vmatprep.subr.bf16.mxu0 %v869
    %1025 = vmatpush1.bf16.msra.mxu0 %v868
    %1026 = vmatprep.subr.bf16.mxu0 %v872
    %1027 = vmatpush1.bf16.msra.mxu0 %v871
    %1028 = vmatprep.subr.bf16.mxu0 %v875
    %1029 = vmatpush1.bf16.msra.mxu0 %v874
    %1030 = vmatprep.subr.bf16.mxu0 %v878
    %1031 = vmatpush1.bf16.msra.mxu0 %v877
    %1032 = vmatprep.subr.bf16.mxu0 %v881
    %1033 = vmatpush1.bf16.msra.mxu0 %v880
    %1034 = vmatprep.subr.bf16.mxu0 %v884
    %1035 = vmatpush1.bf16.msra.mxu0 %v883
    %1036 = vmatprep.subr.bf16.mxu0 %v887
    %1037 = vmatpush1.bf16.msra.mxu0 %v886
    %1038 = vmatprep.subr.bf16.mxu0 %v890
    %1039 = vmatpush1.bf16.msra.mxu0 %v889
    %1040 = vmatprep.subr.bf16.mxu0 %v893
    %1041 = vmatpush1.bf16.msra.mxu0 %v892
    %1042 = vmatprep.subr.bf16.mxu0 %v896
    %1043 = vmatpush1.bf16.msra.mxu0 %v895
    %1044 = vmatprep.subr.bf16.mxu0 %v899
    %1045 = vmatpush1.bf16.msra.mxu0 %v898
    %1046 = vmatprep.subr.bf16.mxu0 %v902
    %1047 = vmatpush1.bf16.msra.mxu0 %v901
    %1048 = vmatprep.mubr.bf16.mxu0 %v517
    %1049 = vmatmul.mubr.bf16.gmra.mrb[0].mxu0 %v516
    %v1050 = vpop.f32.mrb[0].mxu0
    %v1051 = vadd.f32 %v1004, %v1050
    %v1052 = vpop.f32.mrb[0].mxu0
    %v1053 = vadd.f32 %v1008, %v1052
    %v1054 = vpop.f32.mrb[0].mxu0
    %v1055 = vpop.f32.mrb[0].mxu0
    %1056 = vdwg.mxu0
    %1057 = vmatprep.subr.bf16.mxu0 %v905
    %1058 = vmatpush1.bf16.msra.mxu0 %v904
    %1059 = vmatprep.subr.bf16.mxu0 %v908
    %1060 = vmatpush1.bf16.msra.mxu0 %v907
    %1061 = vmatprep.subr.bf16.mxu0 %v911
    %1062 = vmatpush1.bf16.msra.mxu0 %v910
    %1063 = vmatprep.subr.bf16.mxu0 %v914
    %1064 = vmatpush1.bf16.msra.mxu0 %v913
    %1065 = vmatprep.subr.bf16.mxu0 %v917
    %1066 = vmatpush1.bf16.msra.mxu0 %v916
    %1067 = vmatprep.subr.bf16.mxu0 %v920
    %1068 = vmatpush1.bf16.msra.mxu0 %v919
    %1069 = vmatprep.subr.bf16.mxu0 %v923
    %1070 = vmatpush1.bf16.msra.mxu0 %v922
    %1071 = vmatprep.subr.bf16.mxu0 %v926
    %1072 = vmatpush1.bf16.msra.mxu0 %v925
    %1073 = vmatprep.subr.bf16.mxu0 0
    %1074 = vmatpush1.bf16.msra.mxu0 0
    %1075 = vmatprep.subr.bf16.mxu0 0
    %1076 = vmatpush1.bf16.msra.mxu0 0
    %1077 = vmatprep.subr.bf16.mxu0 0
    %1078 = vmatpush1.bf16.msra.mxu0 0
    %1079 = vmatprep.subr.bf16.mxu0 0
    %1080 = vmatpush1.bf16.msra.mxu0 0
    %1081 = vmatprep.subr.bf16.mxu0 0
    %1082 = vmatpush1.bf16.msra.mxu0 0
    %1083 = vmatprep.subr.bf16.mxu0 0
    %1084 = vmatpush1.bf16.msra.mxu0 0
    %1085 = vmatprep.subr.bf16.mxu0 0
    %1086 = vmatpush1.bf16.msra.mxu0 0
    %1087 = vmatprep.subr.bf16.mxu0 0
    %1088 = vmatpush1.bf16.msra.mxu0 0
    %1089 = vmatprep.mubr.bf16.mxu0 0
    %1090 = vmatmul.mubr.bf16.gmra.mrb[0].mxu0 %v518
    %v1091 = vpop.f32.mrb[0].mxu0
    %v1092 = vadd.f32 %v1051, %v1091
    %v1093 = vpop.f32.mrb[0].mxu0
    %v1094 = vadd.f32 %v1053, %v1093
    %v1095 = vpop.f32.mrb[0].mxu0
    %v1096 = vpop.f32.mrb[0].mxu0
    %1097 = vdwg.mxu0
    %1098 = vmatprep.subr.bf16.mxu0 0
    %1099 = vmatpush1.bf16.msra.mxu0 %v858
    %1100 = vmatprep.subr.bf16.mxu0 0
    %1101 = vmatpush1.bf16.msra.mxu0 %v861
    %1102 = vmatprep.subr.bf16.mxu0 0
    %1103 = vmatpush1.bf16.msra.mxu0 %v864
    %1104 = vmatprep.subr.bf16.mxu0 0
    %1105 = vmatpush1.bf16.msra.mxu0 %v867
    %1106 = vmatprep.subr.bf16.mxu0 0
    %1107 = vmatpush1.bf16.msra.mxu0 %v870
    %1108 = vmatprep.subr.bf16.mxu0 0
    %1109 = vmatpush1.bf16.msra.mxu0 %v873
    %1110 = vmatprep.subr.bf16.mxu0 0
    %1111 = vmatpush1.bf16.msra.mxu0 %v876
    %1112 = vmatprep.subr.bf16.mxu0 0
    %1113 = vmatpush1.bf16.msra.mxu0 %v879
    %1114 = vmatprep.subr.bf16.mxu0 0
    %1115 = vmatpush1.bf16.msra.mxu0 %v882
    %1116 = vmatprep.subr.bf16.mxu0 0
    %1117 = vmatpush1.bf16.msra.mxu0 %v885
    %1118 = vmatprep.subr.bf16.mxu0 0
    %1119 = vmatpush1.bf16.msra.mxu0 %v888
    %1120 = vmatprep.subr.bf16.mxu0 0
    %1121 = vmatpush1.bf16.msra.mxu0 %v891
    %1122 = vmatprep.subr.bf16.mxu0 0
    %1123 = vmatpush1.bf16.msra.mxu0 %v894
    %1124 = vmatprep.subr.bf16.mxu0 0
    %1125 = vmatpush1.bf16.msra.mxu0 %v897
    %1126 = vmatprep.subr.bf16.mxu0 0
    %1127 = vmatpush1.bf16.msra.mxu0 %v900
    %1128 = vmatprep.subr.bf16.mxu0 0
    %1129 = vmatpush1.bf16.msra.mxu0 %v903
    %1130 = vmatprep.mubr.bf16.mxu0 %v517
    %1131 = vmatmul.mubr.bf16.gmra.mrb[0].mxu0 %v516
    %v1132 = vpop.f32.mrb[0].mxu0
    %v1133 = vadd.f32 %v1012, %v1132
    %v1134 = vpop.f32.mrb[0].mxu0
    %v1135 = vpop.f32.mrb[0].mxu0
    %v1136 = vpop.f32.mrb[0].mxu0
    %1137 = vdwg.mxu0
    %1138 = vmatprep.subr.bf16.mxu0 0
    %1139 = vmatpush1.bf16.msra.mxu0 %v906
    %1140 = vmatprep.subr.bf16.mxu0 0
    %1141 = vmatpush1.bf16.msra.mxu0 %v909
    %1142 = vmatprep.subr.bf16.mxu0 0
    %1143 = vmatpush1.bf16.msra.mxu0 %v912
    %1144 = vmatprep.subr.bf16.mxu0 0
    %1145 = vmatpush1.bf16.msra.mxu0 %v915
    %1146 = vmatprep.subr.bf16.mxu0 0
    %1147 = vmatpush1.bf16.msra.mxu0 %v918
    %1148 = vmatprep.subr.bf16.mxu0 0
    %1149 = vmatpush1.bf16.msra.mxu0 %v921
    %1150 = vmatprep.subr.bf16.mxu0 0
    %1151 = vmatpush1.bf16.msra.mxu0 %v924
    %1152 = vmatprep.subr.bf16.mxu0 0
    %1153 = vmatpush1.bf16.msra.mxu0 %v927
    %1154 = vmatprep.subr.bf16.mxu0 0
    %1155 = vmatpush1.bf16.msra.mxu0 0
    %1156 = vmatprep.subr.bf16.mxu0 0
    %1157 = vmatpush1.bf16.msra.mxu0 0
    %1158 = vmatprep.subr.bf16.mxu0 0
    %1159 = vmatpush1.bf16.msra.mxu0 0
    %1160 = vmatprep.subr.bf16.mxu0 0
    %1161 = vmatpush1.bf16.msra.mxu0 0
    %1162 = vmatprep.subr.bf16.mxu0 0
    %1163 = vmatpush1.bf16.msra.mxu0 0
    %1164 = vmatprep.subr.bf16.mxu0 0
    %1165 = vmatpush1.bf16.msra.mxu0 0
    %1166 = vmatprep.subr.bf16.mxu0 0
    %1167 = vmatpush1.bf16.msra.mxu0 0
    %1168 = vmatprep.subr.bf16.mxu0 0
    %1169 = vmatpush1.bf16.msra.mxu0 0
    %1170 = vmatprep.mubr.bf16.mxu0 0
    %1171 = vmatmul.mubr.bf16.gmra.mrb[0].mxu0 %v518
    %v1172 = vpop.f32.mrb[0].mxu0
    %v1173 = vadd.f32 %v1133, %v1172
    %v1174 = vpop.f32.mrb[0].mxu0
    %v1175 = vpop.f32.mrb[0].mxu0
    %v1176 = vpop.f32.mrb[0].mxu0
    %1177 = vdwg.mxu0
    %v1178 = vmax.f32 %v1092, 0.0
    %v1179 = vmax.f32 %v1094, 0.0
    %v1180 = vmax.f32 %v1173, 0.0
    %v1181 = vpack.c.bf16 %v1178, %v1178
    %v1182 = vpack.c.bf16 %v1179, %v1179
    %v1183 = vpack.c.bf16 %v1180, %v1180
    %v1184 = vld [vmem:[#allocation8] sm:$0xf]
    %v1185 = vld [vmem:[#allocation8 + $0x4] sm:$0xf]
    %v1186 = vld [vmem:[#allocation8 + $0x8] sm:$0xf]
    %v1187 = vld [vmem:[#allocation8 + $0xc] sm:$0xf]
    %v1188 = vld [vmem:[#allocation8 + $0x10] sm:$0xf]
    %v1189 = vld [vmem:[#allocation8 + $0x14] sm:$0xf]
    %v1190 = vld [vmem:[#allocation8 + $0x18] sm:$0xf]
    %v1191 = vld [vmem:[#allocation8 + $0x1c] sm:$0xf]
    %v1192 = vld [vmem:[#allocation8 + $0x20] sm:$0xf]
    %v1193 = vld [vmem:[#allocation8 + $0x24] sm:$0xf]
    %v1194 = vld [vmem:[#allocation8 + $0x28] sm:$0xf]
    %v1195 = vld [vmem:[#allocation8 + $0x2c] sm:$0xf]
    %v1196 = vld [vmem:[#allocation8 + $0x30] sm:$0xf]
    %v1197 = vld [vmem:[#allocation8 + $0x34] sm:$0xf]
    %v1198 = vld [vmem:[#allocation8 + $0x38] sm:$0xf]
    %v1199 = vld [vmem:[#allocation8 + $0x3c] sm:$0xf]
    %v1200 = vld [vmem:[#allocation8 + $0x40] sm:$0xf]
    %v1201 = vld [vmem:[#allocation8 + $0x44] sm:$0xf]
    %v1202 = vld [vmem:[#allocation8 + $0x48] sm:$0xf]
    %v1203 = vld [vmem:[#allocation8 + $0x4c] sm:$0xf]
    %v1204 = vld [vmem:[#allocation8 + $0x50] sm:$0xf]
    %v1205 = vld [vmem:[#allocation8 + $0x54] sm:$0xf]
    %v1206 = vld [vmem:[#allocation8 + $0x58] sm:$0xf]
    %v1207 = vld [vmem:[#allocation8 + $0x5c] sm:$0xf]
    %v1208 = vld [vmem:[#allocation8 + $0x60] sm:$0xf]
    %v1209 = vld [vmem:[#allocation8 + $0x64] sm:$0xf]
    %v1210 = vld [vmem:[#allocation8 + $0x68] sm:$0xf]
    %v1211 = vld [vmem:[#allocation8 + $0x6c] sm:$0xf]
    %v1212 = vld [vmem:[#allocation8 + $0x70] sm:$0xf]
    %v1213 = vld [vmem:[#allocation8 + $0x74] sm:$0xf]
    %v1214 = vld [vmem:[#allocation8 + $0x78] sm:$0xf]
    %v1215 = vld [vmem:[#allocation8 + $0x7c] sm:$0xf]
    %v1216 = vld [vmem:[#allocation8 + $0x80] sm:$0xf]
    %v1217 = vld [vmem:[#allocation8 + $0x84] sm:$0xf]
    %v1218 = vld [vmem:[#allocation8 + $0x88] sm:$0xf]
    %v1219 = vld [vmem:[#allocation8 + $0x8c] sm:$0xf]
    %v1220 = vld [vmem:[#allocation8 + $0x90] sm:$0xf]
    %v1221 = vld [vmem:[#allocation8 + $0x94] sm:$0xf]
    %v1222 = vld [vmem:[#allocation8 + $0x98] sm:$0xf]
    %v1223 = vld [vmem:[#allocation8 + $0x9c] sm:$0xf]
    %v1224 = vld [vmem:[#allocation8 + $0xa0] sm:$0xf]
    %v1225 = vld [vmem:[#allocation8 + $0xa4] sm:$0xf]
    %v1226 = vld [vmem:[#allocation8 + $0xa8] sm:$0xf]
    %v1227 = vld [vmem:[#allocation8 + $0xac] sm:$0xf]
    %v1228 = vld [vmem:[#allocation8 + $0xb0] sm:$0xf]
    %v1229 = vld [vmem:[#allocation8 + $0xb4] sm:$0xf]
    %v1230 = vld [vmem:[#allocation8 + $0xb8] sm:$0xf]
    %v1231 = vld [vmem:[#allocation8 + $0xbc] sm:$0xf]
    %v1232 = vld [vmem:[%s6] sm:$0x1]
    %v1281 = vunpack.c.l.b16 %v1184
    %v1282 = vunpack.c.l.b16 %v1185
    %v1283 = vunpack.c.l.b16 %v1186
    %v1284 = vunpack.c.l.b16 %v1187
    %v1285 = vunpack.c.l.b16 %v1188
    %v1286 = vunpack.c.l.b16 %v1189
    %v1287 = vunpack.c.l.b16 %v1190
    %v1288 = vunpack.c.l.b16 %v1191
    %v1289 = vunpack.c.l.b16 %v1192
    %v1290 = vunpack.c.l.b16 %v1193
    %v1291 = vunpack.c.l.b16 %v1194
    %v1292 = vunpack.c.l.b16 %v1195
    %v1293 = vunpack.c.l.b16 %v1196
    %v1294 = vunpack.c.l.b16 %v1197
    %v1295 = vunpack.c.l.b16 %v1198
    %v1296 = vunpack.c.l.b16 %v1199
    %v1297 = vunpack.c.l.b16 %v1200
    %v1298 = vunpack.c.l.b16 %v1201
    %v1299 = vunpack.c.l.b16 %v1202
    %v1300 = vunpack.c.l.b16 %v1203
    %v1301 = vunpack.c.l.b16 %v1204
    %v1302 = vunpack.c.l.b16 %v1205
    %v1303 = vunpack.c.l.b16 %v1206
    %v1304 = vunpack.c.l.b16 %v1207
    %v1305 = vunpack.c.l.b16 %v1208
    %v1306 = vunpack.c.l.b16 %v1209
    %v1307 = vunpack.c.l.b16 %v1210
    %v1308 = vunpack.c.l.b16 %v1211
    %v1309 = vunpack.c.l.b16 %v1212
    %v1310 = vunpack.c.l.b16 %v1213
    %v1311 = vunpack.c.l.b16 %v1214
    %v1312 = vunpack.c.l.b16 %v1215
    %v1313 = vunpack.c.l.b16 %v1216
    %v1314 = vunpack.c.l.b16 %v1217
    %v1315 = vunpack.c.l.b16 %v1218
    %v1316 = vunpack.c.l.b16 %v1219
    %v1317 = vunpack.c.l.b16 %v1220
    %v1318 = vunpack.c.l.b16 %v1221
    %v1319 = vunpack.c.l.b16 %v1222
    %v1320 = vunpack.c.l.b16 %v1223
    %v1321 = vunpack.c.l.b16 %v1224
    %v1322 = vunpack.c.l.b16 %v1225
    %v1323 = vunpack.c.l.b16 %v1226
    %v1324 = vunpack.c.l.b16 %v1227
    %v1325 = vunpack.c.l.b16 %v1228
    %v1326 = vunpack.c.l.b16 %v1229
    %v1327 = vunpack.c.l.b16 %v1230
    %v1328 = vunpack.c.l.b16 %v1231
    %v1329 = vpack.c.b16 %v1282, %v1281
    %v1330 = vpack.c.b16 %v1284, %v1283
    %v1331 = vpack.c.b16 %v1286, %v1285
    %v1332 = vpack.c.b16 %v1288, %v1287
    %v1333 = vpack.c.b16 %v1290, %v1289
    %v1334 = vpack.c.b16 %v1292, %v1291
    %v1335 = vpack.c.b16 %v1294, %v1293
    %v1336 = vpack.c.b16 %v1296, %v1295
    %v1337 = vpack.c.b16 %v1298, %v1297
    %v1338 = vpack.c.b16 %v1300, %v1299
    %v1339 = vpack.c.b16 %v1302, %v1301
    %v1340 = vpack.c.b16 %v1304, %v1303
    %v1341 = vpack.c.b16 %v1306, %v1305
    %v1342 = vpack.c.b16 %v1308, %v1307
    %v1343 = vpack.c.b16 %v1310, %v1309
    %v1344 = vpack.c.b16 %v1312, %v1311
    %v1345 = vpack.c.b16 %v1314, %v1313
    %v1346 = vpack.c.b16 %v1316, %v1315
    %v1347 = vpack.c.b16 %v1318, %v1317
    %v1348 = vpack.c.b16 %v1320, %v1319
    %v1349 = vpack.c.b16 %v1322, %v1321
    %v1350 = vpack.c.b16 %v1324, %v1323
    %v1351 = vpack.c.b16 %v1326, %v1325
    %v1352 = vpack.c.b16 %v1328, %v1327
    %1377 = vmatprep.subr.bf16.mxu0 0
    %1378 = vmatpush1.bf16.msra.mxu0 %v1329
    %1379 = vmatprep.subr.bf16.mxu0 0
    %1380 = vmatpush1.bf16.msra.mxu0 %v1330
    %1381 = vmatprep.subr.bf16.mxu0 0
    %1382 = vmatpush1.bf16.msra.mxu0 %v1331
    %1383 = vmatprep.subr.bf16.mxu0 0
    %1384 = vmatpush1.bf16.msra.mxu0 %v1332
    %1385 = vmatprep.subr.bf16.mxu0 0
    %1386 = vmatpush1.bf16.msra.mxu0 %v1333
    %1387 = vmatprep.subr.bf16.mxu0 0
    %1388 = vmatpush1.bf16.msra.mxu0 %v1334
    %1389 = vmatprep.subr.bf16.mxu0 0
    %1390 = vmatpush1.bf16.msra.mxu0 %v1335
    %1391 = vmatprep.subr.bf16.mxu0 0
    %1392 = vmatpush1.bf16.msra.mxu0 %v1336
    %1393 = vmatprep.subr.bf16.mxu0 0
    %1394 = vmatpush1.bf16.msra.mxu0 %v1337
    %1395 = vmatprep.subr.bf16.mxu0 0
    %1396 = vmatpush1.bf16.msra.mxu0 %v1338
    %1397 = vmatprep.subr.bf16.mxu0 0
    %1398 = vmatpush1.bf16.msra.mxu0 %v1339
    %1399 = vmatprep.subr.bf16.mxu0 0
    %1400 = vmatpush1.bf16.msra.mxu0 %v1340
    %1401 = vmatprep.subr.bf16.mxu0 0
    %1402 = vmatpush1.bf16.msra.mxu0 %v1341
    %1403 = vmatprep.subr.bf16.mxu0 0
    %1404 = vmatpush1.bf16.msra.mxu0 %v1342
    %1405 = vmatprep.subr.bf16.mxu0 0
    %1406 = vmatpush1.bf16.msra.mxu0 %v1343
    %1407 = vmatprep.subr.bf16.mxu0 0
    %1408 = vmatpush1.bf16.msra.mxu0 %v1344
    %1409 = vmatprep.mubr.bf16.mxu0 %v1182
    %1410 = vmatmul.mubr.bf16.gmra.mrb[0].mxu0 %v1181
    %v1411 = vpop.f32.mrb[0].mxu0
    %v1412 = vadd.f32 %v1232, %v1411
    %v1413 = vpop.f32.mrb[0].mxu0
    %v1414 = vpop.f32.mrb[0].mxu0
    %v1415 = vpop.f32.mrb[0].mxu0
    %1416 = vdwg.mxu0
    %1417 = vmatprep.subr.bf16.mxu0 0
    %1418 = vmatpush1.bf16.msra.mxu0 %v1345
    %1419 = vmatprep.subr.bf16.mxu0 0
    %1420 = vmatpush1.bf16.msra.mxu0 %v1346
    %1421 = vmatprep.subr.bf16.mxu0 0
    %1422 = vmatpush1.bf16.msra.mxu0 %v1347
    %1423 = vmatprep.subr.bf16.mxu0 0
    %1424 = vmatpush1.bf16.msra.mxu0 %v1348
    %1425 = vmatprep.subr.bf16.mxu0 0
    %1426 = vmatpush1.bf16.msra.mxu0 %v1349
    %1427 = vmatprep.subr.bf16.mxu0 0
    %1428 = vmatpush1.bf16.msra.mxu0 %v1350
    %1429 = vmatprep.subr.bf16.mxu0 0
    %1430 = vmatpush1.bf16.msra.mxu0 %v1351
    %1431 = vmatprep.subr.bf16.mxu0 0
    %1432 = vmatpush1.bf16.msra.mxu0 %v1352
    %1433 = vmatprep.subr.bf16.mxu0 0
    %1434 = vmatpush1.bf16.msra.mxu0 0
    %1435 = vmatprep.subr.bf16.mxu0 0
    %1436 = vmatpush1.bf16.msra.mxu0 0
    %1437 = vmatprep.subr.bf16.mxu0 0
    %1438 = vmatpush1.bf16.msra.mxu0 0
    %1439 = vmatprep.subr.bf16.mxu0 0
    %1440 = vmatpush1.bf16.msra.mxu0 0
    %1441 = vmatprep.subr.bf16.mxu0 0
    %1442 = vmatpush1.bf16.msra.mxu0 0
    %1443 = vmatprep.subr.bf16.mxu0 0
    %1444 = vmatpush1.bf16.msra.mxu0 0
    %1445 = vmatprep.subr.bf16.mxu0 0
    %1446 = vmatpush1.bf16.msra.mxu0 0
    %1447 = vmatprep.subr.bf16.mxu0 0
    %1448 = vmatpush1.bf16.msra.mxu0 0
    %1449 = vmatprep.mubr.bf16.mxu0 0
    %1450 = vmatmul.mubr.bf16.gmra.mrb[0].mxu0 %v1183
    %v1451 = vpop.f32.mrb[0].mxu0
    %v1452 = vadd.f32 %v1412, %v1451
    %v1453 = vpop.f32.mrb[0].mxu0
    %v1454 = vpop.f32.mrb[0].mxu0
    %v1455 = vpop.f32.mrb[0].mxu0
    %1456 = vdwg.mxu0
    %1457 = vst [vmem:[#allocation10] sm:$0x1] %v1452
    // Predicated region
    $region46: #{tpu_custom_call.1} parent=1 // pred_check
      _
    $region47: #{tpu_custom_call.1} parent=1 // pred_check_branch
      %1459 = sbr.rel (0) target = $region49
    $region48: #{tpu_custom_call.1} parent=1 // pred_region
      %s1461 = ssub.s32 16, 16
      %1462 = vsyncadd [#allocation4], %s1461
      %s1464 = sshll.u32 [#allocation10], 4
      %s1465 = int_to_ptr.vmem [resolvable:$true] %s1464
      %1467 = dma.vmem_to_hbm [thread:$0]  %s1465, 16, %s7, [#allocation4]
    $region49: #{tpu_custom_call.1} parent=1 // pred_fallthru
      _
    // Predicated region
    $region50: #{tpu_custom_call.1} parent=1 // pred_check
      _
    $region51: #{tpu_custom_call.1} parent=1 // pred_check_branch
      %1469 = sbr.rel (0) target = $region53
    $region52: #{tpu_custom_call.1} parent=1 // pred_region
      %1470 = dma.done [#allocation4], 16
    $region53: #{tpu_custom_call.1} parent=1 // pred_fallthru
      _
    %1471 = vsyncpa [#allocation3], 1
    %1472 = vsyncpa [#allocation6], 1
    %1473 = vsyncpa [#allocation9], 1
    %1474 = vsyncpa [#allocation4], 1

</llo_original>
